<compile_context>
chip_gen: v7x
topology: tpu7x:2x2x1
jax: 0.10.0
libtpu: 0.0.40
codegen_flags: <defaults>
</compile_context>

<pallas_src>
import functools

import jax
import jax.numpy as jnp
from jax.experimental import pallas as pl
from jax.experimental.pallas import tpu as pltpu


# ----------------------------- Fused Pallas kernel --------------------------

def _sym_reg_fused_kernel(x_ref, a_sym_ref, a_in_ref, a_out_ref,
                          w1t_ref, w2t_ref, wct_ref,
                          b1_ref, b2_ref, bc_ref, o_ref):
    f32 = jnp.float32

    # Stage 0: h = lin1(x) = x @ W1^T   (bias-free Linear)
    h = jnp.dot(x_ref[...], w1t_ref[...], preferred_element_type=f32)

    b1 = b1_ref[...]          # [1, nhid]   -> broadcasts over rows
    b2 = b2_ref[...]          # [1, out_dim]
    A = (a_sym_ref[...], a_in_ref[...], a_out_ref[...])   # three [N, N] tiles

    # Stage 1: y = lin2(relu(cat_i(A_i @ h + b1)))
    #            = sum_i relu(A_i @ h + b1) @ W2T_i          (concat folded away;
    #              relu-after-concat == relu-per-branch, it is elementwise)
    y = None
    for i in range(3):
        xi = jnp.maximum(jnp.dot(A[i], h, preferred_element_type=f32) + b1, 0.0)
        yi = jnp.dot(xi, w2t_ref[i], preferred_element_type=f32)
        y = yi if y is None else y + yi

    # Stage 2: out = Conv1d_k1(cat_i(A_i @ y + b2))
    #              = sum_i (A_i @ y + b2) @ WcT_i + conv_bias
    acc = None
    for i in range(3):
        zi = jnp.dot(A[i], y, preferred_element_type=f32) + b2
        oi = jnp.dot(zi, wct_ref[i], preferred_element_type=f32)
        acc = oi if acc is None else acc + oi

    o_ref[...] = (acc + bc_ref[...]).astype(o_ref.dtype)


def sym_reg_fused_forward(p, x, A_sym, A_in, A_out):
    """Single pallas_call for the whole SymRegLayer2 forward (dense A form)."""
    N, input_dim = x.shape
    nhid = p["w1t"].shape[1]
    out_dim = p["w2t"].shape[2]

    full2d = lambda shape: pl.BlockSpec(shape, lambda i: (0, 0))
    full3d = lambda shape: pl.BlockSpec(shape, lambda i: (0, 0, 0))

    return pl.pallas_call(
        _sym_reg_fused_kernel,
        out_shape=jax.ShapeDtypeStruct((N, out_dim), jnp.float32),
        grid=(1,),
        in_specs=[
            full2d((N, input_dim)),            # x
            full2d((N, N)),                    # A_sym
            full2d((N, N)),                    # A_in
            full2d((N, N)),                    # A_out
            full2d((input_dim, nhid)),         # W1^T
            full3d((3, nhid, out_dim)),        # W2^T split per branch
            full3d((3, out_dim, out_dim)),     # Wc^T split per branch
            full2d((1, nhid)),                 # bias1
            full2d((1, out_dim)),              # bias2
            full2d((1, out_dim)),              # conv bias
        ],
        out_specs=full2d((N, out_dim)),
        compiler_params=pltpu.CompilerParams(
            dimension_semantics=("arbitrary",)),
    )(x, A_sym, A_in, A_out, p["w1t"], p["w2t"], p["wct"],
      p["bias1"], p["bias2"], p["conv_b"])


# --------------------------- JAX glue (gcn_norm) ----------------------------

def dense_gcn_adj(edge_index, edge_weight, num_nodes):
    """Dense normalized GCN adjacency: A @ x reproduces DGCNConv.forward.

    Mirrors gcn_norm(..., improved=False, add_self_loops=True).  The synthetic
    edge lists contain no self-loops, so appending all self-loops with weight
    1.0 matches PyG's add_remaining_self_loops exactly.
    TODO(synk): handle pre-existing self-loops (weight-preserving replacement)
    for arbitrary input graphs.
    """
    row = edge_index[0]
    col = edge_index[1]
    if edge_weight is None:
        edge_weight = jnp.ones(row.shape, dtype=jnp.float32)
    edge_weight = edge_weight.astype(jnp.float32)

    loop = jnp.arange(num_nodes, dtype=row.dtype)
    row = jnp.concatenate([row, loop])
    col = jnp.concatenate([col, loop])
    edge_weight = jnp.concatenate(
        [edge_weight, jnp.ones((num_nodes,), jnp.float32)])

    deg = jnp.zeros((num_nodes,), jnp.float32).at[col].add(edge_weight)
    deg_inv_sqrt = jnp.where(deg > 0, jax.lax.rsqrt(deg), 0.0)
    norm_w = deg_inv_sqrt[row] * edge_weight * deg_inv_sqrt[col]

    # Message passing: out[target] += w * x[source]  =>  A[col, row] += w
    return jnp.zeros((num_nodes, num_nodes), jnp.float32).at[col, row].add(norm_w)


# ------------------------- Parameter prep + jitted apply ---------------------

def prepare_params(raw):
    """One-time hoist of transposes / branch-splits out of the call path."""
    nhid = raw["lin1_w"].shape[0]
    out_dim = raw["lin2_w"].shape[0]
    return {
        "w1t": jnp.asarray(raw["lin1_w"].T, jnp.float32),                          # [in, nhid]
        "w2t": jnp.asarray(raw["lin2_w"].T, jnp.float32).reshape(3, nhid, out_dim),
        "wct": jnp.asarray(raw["conv_w"].T, jnp.float32).reshape(3, out_dim, out_dim),
        "bias1": jnp.asarray(raw["bias1"], jnp.float32).reshape(1, nhid),
        "bias2": jnp.asarray(raw["bias2"], jnp.float32).reshape(1, out_dim),
        "conv_b": jnp.asarray(raw["conv_b"], jnp.float32).reshape(1, out_dim),
    }


@functools.partial(jax.jit, static_argnames=("num_nodes",))
def sym_reg_layer2_apply(prepared, x, edge_index, edge_in, in_w, edge_out, out_w,
                         *, num_nodes):
    # edge_Qin_in_tensor / edge_Qin_out_tensor are unused by the PyTorch forward.
    A_sym = dense_gcn_adj(edge_index, None, num_nodes)
    A_in = dense_gcn_adj(edge_in, in_w, num_nodes)
    A_out = dense_gcn_adj(edge_out, out_w, num_nodes)
    return sym_reg_fused_forward(prepared, x, A_sym, A_in, A_out)


# ------------------------------ Pure-JAX reference ---------------------------

def _reference_forward(raw, x, A_sym, A_in, A_out):
    h = x @ raw["lin1_w"].T
    x1 = A_sym @ h + raw["bias1"]
    x2 = A_in @ h + raw["bias1"]
    x3 = A_out @ h + raw["bias1"]
    xc = jax.nn.relu(jnp.concatenate([x1, x2, x3], axis=-1))
    y = xc @ raw["lin2_w"].T
    y1 = A_sym @ y + raw["bias2"]
    y2 = A_in @ y + raw["bias2"]
    y3 = A_out @ y + raw["bias2"]
    yc = jnp.concatenate([y1, y2, y3], axis=-1)
    return yc @ raw["conv_w"].T + raw["conv_b"].reshape(1, -1)


# --------------------------------- Main --------------------------------------

if __name__ == "__main__":
    N = 16            # nodes
    input_dim = 8
    nhid = 32
    out_dim = 8
    E = 40            # edges per edge set

    key = jax.random.PRNGKey(0)
    k_x, k_w1, k_w2, k_wc, k_bc, k_inw, k_outw = jax.random.split(key, 7)

    # deterministic synthetic parameters (no checkpoint load)
    raw_params = {
        "lin1_w": 0.1 * jax.random.normal(k_w1, (nhid, input_dim), jnp.float32),
        "lin2_w": 0.1 * jax.random.normal(k_w2, (out_dim, 3 * nhid), jnp.float32),
        "bias1": jnp.zeros((1, nhid), jnp.float32),
        "bias2": jnp.zeros((1, out_dim), jnp.float32),
        "conv_w": 0.1 * jax.random.normal(k_wc, (out_dim, 3 * out_dim), jnp.float32),
        "conv_b": 0.01 * jax.random.normal(k_bc, (out_dim,), jnp.float32),
    }
    prepared = prepare_params(raw_params)

    # node features
    x = jax.random.normal(k_x, (N, input_dim), jnp.float32)

    # deterministic synthetic edge lists (guaranteed no self loops)
    def make_edges(mult, off):
        src = jnp.arange(E, dtype=jnp.int32) % N
        dst = (jnp.arange(E, dtype=jnp.int32) * mult + off) % N
        dst = jnp.where(dst == src, (dst + 1) % N, dst)
        return jnp.stack([src, dst], axis=0)

    edge_index = make_edges(3, 1)
    edge_in = make_edges(5, 2)
    edge_out = make_edges(7, 3)
    in_w = jax.random.uniform(k_inw, (E,), jnp.float32, 0.1, 1.0)
    out_w = jax.random.uniform(k_outw, (E,), jnp.float32, 0.1, 1.0)

    out = sym_reg_layer2_apply(prepared, x, edge_index, edge_in, in_w,
                               edge_out, out_w, num_nodes=N)
    out = jax.block_until_ready(out)
    assert out.shape == (N, out_dim)

    # correctness check against a pure-JAX reference of the PyTorch math
    A_sym = dense_gcn_adj(edge_index, None, N)
    A_in = dense_gcn_adj(edge_in, in_w, N)
    A_out = dense_gcn_adj(edge_out, out_w, N)
    ref = _reference_forward(raw_params, x, A_sym, A_in, A_out)
    assert float(jnp.max(jnp.abs(out - ref))) < 1e-3

    print("KERNEL_OK")
</pallas_src>

<mosaic_0001>
module attributes {stable_mosaic.version = 11 : i64} {
  func.func @_sym_reg_fused_kernel(%arg0: i32, %arg1: memref<16x8xf32, #tpu.memory_space<vmem>>, %arg2: memref<16x16xf32, #tpu.memory_space<vmem>>, %arg3: memref<16x16xf32, #tpu.memory_space<vmem>>, %arg4: memref<16x16xf32, #tpu.memory_space<vmem>>, %arg5: memref<8x32xf32, #tpu.memory_space<vmem>>, %arg6: memref<3x32x8xf32, #tpu.memory_space<vmem>>, %arg7: memref<3x8x8xf32, #tpu.memory_space<vmem>>, %arg8: memref<1x32xf32, #tpu.memory_space<vmem>>, %arg9: memref<1x8xf32, #tpu.memory_space<vmem>>, %arg10: memref<1x8xf32, #tpu.memory_space<vmem>>, %arg11: memref<16x8xf32, #tpu.memory_space<vmem>>) attributes {dimension_semantics = [#tpu.dimension_semantics<arbitrary>], iteration_bounds = array<i64: 1>, scalar_prefetch = 0 : i64, scratch_operands = 0 : i64, tpu.core_type = #tpu.core_type<tc>, window_params = [{pipeline_mode = #tpu.pipeline_mode<synchronous>, transform_indices = @transform_0, window_bounds = array<i64: 16, 8>}, {pipeline_mode = #tpu.pipeline_mode<synchronous>, transform_indices = @transform_1, window_bounds = array<i64: 16, 16>}, {pipeline_mode = #tpu.pipeline_mode<synchronous>, transform_indices = @transform_2, window_bounds = array<i64: 16, 16>}, {pipeline_mode = #tpu.pipeline_mode<synchronous>, transform_indices = @transform_3, window_bounds = array<i64: 16, 16>}, {pipeline_mode = #tpu.pipeline_mode<synchronous>, transform_indices = @transform_4, window_bounds = array<i64: 8, 32>}, {pipeline_mode = #tpu.pipeline_mode<synchronous>, transform_indices = @transform_5, window_bounds = array<i64: 3, 32, 8>}, {pipeline_mode = #tpu.pipeline_mode<synchronous>, transform_indices = @transform_6, window_bounds = array<i64: 3, 8, 8>}, {pipeline_mode = #tpu.pipeline_mode<synchronous>, transform_indices = @transform_7, window_bounds = array<i64: 1, 32>}, {pipeline_mode = #tpu.pipeline_mode<synchronous>, transform_indices = @transform_8, window_bounds = array<i64: 1, 8>}, {pipeline_mode = #tpu.pipeline_mode<synchronous>, transform_indices = @transform_9, window_bounds = array<i64: 1, 8>}, {pipeline_mode = #tpu.pipeline_mode<synchronous>, transform_indices = @transform_10, window_bounds = array<i64: 16, 8>}]} {
    %c0 = arith.constant 0 : index
    %c0_0 = arith.constant 0 : index
    %0 = vector.load %arg1[%c0, %c0_0] : memref<16x8xf32, #tpu.memory_space<vmem>>, vector<16x8xf32>
    %c0_1 = arith.constant 0 : index
    %c0_2 = arith.constant 0 : index
    %1 = vector.load %arg5[%c0_1, %c0_2] : memref<8x32xf32, #tpu.memory_space<vmem>>, vector<8x32xf32>
    %cst = arith.constant dense<0.000000e+00> : vector<16x32xf32>
    %2 = tpu.matmul %0, %1, %cst {dimension_numbers = #tpu.dot_dimension_numbers<[1], [0], [0], [1], [0, 0, 1, 1], [], []>} : vector<16x8xf32>, vector<8x32xf32>, vector<16x32xf32> -> vector<16x32xf32>
    %c0_3 = arith.constant 0 : index
    %c0_4 = arith.constant 0 : index
    %3 = vector.load %arg8[%c0_3, %c0_4] : memref<1x32xf32, #tpu.memory_space<vmem>>, vector<1x32xf32>
    %c0_5 = arith.constant 0 : index
    %c0_6 = arith.constant 0 : index
    %4 = vector.load %arg9[%c0_5, %c0_6] : memref<1x8xf32, #tpu.memory_space<vmem>>, vector<1x8xf32>
    %c0_7 = arith.constant 0 : index
    %c0_8 = arith.constant 0 : index
    %5 = vector.load %arg2[%c0_7, %c0_8] : memref<16x16xf32, #tpu.memory_space<vmem>>, vector<16x16xf32>
    %c0_9 = arith.constant 0 : index
    %c0_10 = arith.constant 0 : index
    %6 = vector.load %arg3[%c0_9, %c0_10] : memref<16x16xf32, #tpu.memory_space<vmem>>, vector<16x16xf32>
    %c0_11 = arith.constant 0 : index
    %c0_12 = arith.constant 0 : index
    %7 = vector.load %arg4[%c0_11, %c0_12] : memref<16x16xf32, #tpu.memory_space<vmem>>, vector<16x16xf32>
    %cst_13 = arith.constant dense<0.000000e+00> : vector<16x32xf32>
    %8 = tpu.matmul %5, %2, %cst_13 {dimension_numbers = #tpu.dot_dimension_numbers<[1], [0], [0], [1], [0, 0, 1, 1], [], []>} : vector<16x16xf32>, vector<16x32xf32>, vector<16x32xf32> -> vector<16x32xf32>
    %9 = vector.broadcast %3 : vector<1x32xf32> to vector<16x32xf32>
    %10 = arith.addf %8, %9 : vector<16x32xf32>
    %cst_14 = arith.constant 0.000000e+00 : f32
    %11 = vector.broadcast %cst_14 : f32 to vector<16x32xf32>
    %12 = arith.maximumf %10, %11 : vector<16x32xf32>
    %c0_15 = arith.constant 0 : index
    %c0_16 = arith.constant 0 : index
    %c0_17 = arith.constant 0 : index
    %13 = vector.load %arg6[%c0_15, %c0_16, %c0_17] : memref<3x32x8xf32, #tpu.memory_space<vmem>>, vector<1x32x8xf32>
    %14 = vector.shape_cast %13 : vector<1x32x8xf32> to vector<32x8xf32>
    %cst_18 = arith.constant dense<0.000000e+00> : vector<16x8xf32>
    %15 = tpu.matmul %12, %14, %cst_18 {dimension_numbers = #tpu.dot_dimension_numbers<[1], [0], [0], [1], [0, 0, 1, 1], [], []>} : vector<16x32xf32>, vector<32x8xf32>, vector<16x8xf32> -> vector<16x8xf32>
    %cst_19 = arith.constant dense<0.000000e+00> : vector<16x32xf32>
    %16 = tpu.matmul %6, %2, %cst_19 {dimension_numbers = #tpu.dot_dimension_numbers<[1], [0], [0], [1], [0, 0, 1, 1], [], []>} : vector<16x16xf32>, vector<16x32xf32>, vector<16x32xf32> -> vector<16x32xf32>
    %17 = vector.broadcast %3 : vector<1x32xf32> to vector<16x32xf32>
    %18 = arith.addf %16, %17 : vector<16x32xf32>
    %cst_20 = arith.constant 0.000000e+00 : f32
    %19 = vector.broadcast %cst_20 : f32 to vector<16x32xf32>
    %20 = arith.maximumf %18, %19 : vector<16x32xf32>
    %c1 = arith.constant 1 : index
    %c0_21 = arith.constant 0 : index
    %c0_22 = arith.constant 0 : index
    %21 = vector.load %arg6[%c1, %c0_21, %c0_22] : memref<3x32x8xf32, #tpu.memory_space<vmem>>, vector<1x32x8xf32>
    %22 = vector.shape_cast %21 : vector<1x32x8xf32> to vector<32x8xf32>
    %cst_23 = arith.constant dense<0.000000e+00> : vector<16x8xf32>
    %23 = tpu.matmul %20, %22, %cst_23 {dimension_numbers = #tpu.dot_dimension_numbers<[1], [0], [0], [1], [0, 0, 1, 1], [], []>} : vector<16x32xf32>, vector<32x8xf32>, vector<16x8xf32> -> vector<16x8xf32>
    %24 = arith.addf %15, %23 : vector<16x8xf32>
    %cst_24 = arith.constant dense<0.000000e+00> : vector<16x32xf32>
    %25 = tpu.matmul %7, %2, %cst_24 {dimension_numbers = #tpu.dot_dimension_numbers<[1], [0], [0], [1], [0, 0, 1, 1], [], []>} : vector<16x16xf32>, vector<16x32xf32>, vector<16x32xf32> -> vector<16x32xf32>
    %26 = vector.broadcast %3 : vector<1x32xf32> to vector<16x32xf32>
    %27 = arith.addf %25, %26 : vector<16x32xf32>
    %cst_25 = arith.constant 0.000000e+00 : f32
    %28 = vector.broadcast %cst_25 : f32 to vector<16x32xf32>
    %29 = arith.maximumf %27, %28 : vector<16x32xf32>
    %c2 = arith.constant 2 : index
    %c0_26 = arith.constant 0 : index
    %c0_27 = arith.constant 0 : index
    %30 = vector.load %arg6[%c2, %c0_26, %c0_27] : memref<3x32x8xf32, #tpu.memory_space<vmem>>, vector<1x32x8xf32>
    %31 = vector.shape_cast %30 : vector<1x32x8xf32> to vector<32x8xf32>
    %cst_28 = arith.constant dense<0.000000e+00> : vector<16x8xf32>
    %32 = tpu.matmul %29, %31, %cst_28 {dimension_numbers = #tpu.dot_dimension_numbers<[1], [0], [0], [1], [0, 0, 1, 1], [], []>} : vector<16x32xf32>, vector<32x8xf32>, vector<16x8xf32> -> vector<16x8xf32>
    %33 = arith.addf %24, %32 : vector<16x8xf32>
    %cst_29 = arith.constant dense<0.000000e+00> : vector<16x8xf32>
    %34 = tpu.matmul %5, %33, %cst_29 {dimension_numbers = #tpu.dot_dimension_numbers<[1], [0], [0], [1], [0, 0, 1, 1], [], []>} : vector<16x16xf32>, vector<16x8xf32>, vector<16x8xf32> -> vector<16x8xf32>
    %35 = vector.broadcast %4 : vector<1x8xf32> to vector<16x8xf32>
    %36 = arith.addf %34, %35 : vector<16x8xf32>
    %c0_30 = arith.constant 0 : index
    %c0_31 = arith.constant 0 : index
    %c0_32 = arith.constant 0 : index
    %37 = vector.load %arg7[%c0_30, %c0_31, %c0_32] : memref<3x8x8xf32, #tpu.memory_space<vmem>>, vector<1x8x8xf32>
    %38 = vector.shape_cast %37 : vector<1x8x8xf32> to vector<8x8xf32>
    %cst_33 = arith.constant dense<0.000000e+00> : vector<16x8xf32>
    %39 = tpu.matmul %36, %38, %cst_33 {dimension_numbers = #tpu.dot_dimension_numbers<[1], [0], [0], [1], [0, 0, 1, 1], [], []>} : vector<16x8xf32>, vector<8x8xf32>, vector<16x8xf32> -> vector<16x8xf32>
    %cst_34 = arith.constant dense<0.000000e+00> : vector<16x8xf32>
    %40 = tpu.matmul %6, %33, %cst_34 {dimension_numbers = #tpu.dot_dimension_numbers<[1], [0], [0], [1], [0, 0, 1, 1], [], []>} : vector<16x16xf32>, vector<16x8xf32>, vector<16x8xf32> -> vector<16x8xf32>
    %41 = vector.broadcast %4 : vector<1x8xf32> to vector<16x8xf32>
    %42 = arith.addf %40, %41 : vector<16x8xf32>
    %c1_35 = arith.constant 1 : index
    %c0_36 = arith.constant 0 : index
    %c0_37 = arith.constant 0 : index
    %43 = vector.load %arg7[%c1_35, %c0_36, %c0_37] : memref<3x8x8xf32, #tpu.memory_space<vmem>>, vector<1x8x8xf32>
    %44 = vector.shape_cast %43 : vector<1x8x8xf32> to vector<8x8xf32>
    %cst_38 = arith.constant dense<0.000000e+00> : vector<16x8xf32>
    %45 = tpu.matmul %42, %44, %cst_38 {dimension_numbers = #tpu.dot_dimension_numbers<[1], [0], [0], [1], [0, 0, 1, 1], [], []>} : vector<16x8xf32>, vector<8x8xf32>, vector<16x8xf32> -> vector<16x8xf32>
    %46 = arith.addf %39, %45 : vector<16x8xf32>
    %cst_39 = arith.constant dense<0.000000e+00> : vector<16x8xf32>
    %47 = tpu.matmul %7, %33, %cst_39 {dimension_numbers = #tpu.dot_dimension_numbers<[1], [0], [0], [1], [0, 0, 1, 1], [], []>} : vector<16x16xf32>, vector<16x8xf32>, vector<16x8xf32> -> vector<16x8xf32>
    %48 = vector.broadcast %4 : vector<1x8xf32> to vector<16x8xf32>
    %49 = arith.addf %47, %48 : vector<16x8xf32>
    %c2_40 = arith.constant 2 : index
    %c0_41 = arith.constant 0 : index
    %c0_42 = arith.constant 0 : index
    %50 = vector.load %arg7[%c2_40, %c0_41, %c0_42] : memref<3x8x8xf32, #tpu.memory_space<vmem>>, vector<1x8x8xf32>
    %51 = vector.shape_cast %50 : vector<1x8x8xf32> to vector<8x8xf32>
    %cst_43 = arith.constant dense<0.000000e+00> : vector<16x8xf32>
    %52 = tpu.matmul %49, %51, %cst_43 {dimension_numbers = #tpu.dot_dimension_numbers<[1], [0], [0], [1], [0, 0, 1, 1], [], []>} : vector<16x8xf32>, vector<8x8xf32>, vector<16x8xf32> -> vector<16x8xf32>
    %53 = arith.addf %46, %52 : vector<16x8xf32>
    %c0_44 = arith.constant 0 : index
    %c0_45 = arith.constant 0 : index
    %54 = vector.load %arg10[%c0_44, %c0_45] : memref<1x8xf32, #tpu.memory_space<vmem>>, vector<1x8xf32>
    %55 = vector.broadcast %54 : vector<1x8xf32> to vector<16x8xf32>
    %56 = arith.addf %53, %55 : vector<16x8xf32>
    %c0_46 = arith.constant 0 : index
    %c0_47 = arith.constant 0 : index
    %57 = vector.load %arg11[%c0_46, %c0_47] : memref<16x8xf32, #tpu.memory_space<vmem>>, vector<16x8xf32>
    tpu.vector_store %arg11[%c0_46, %c0_47], %56 {strides = array<i32>} : memref<16x8xf32, #tpu.memory_space<vmem>>, vector<16x8xf32>,
    return
  }
  func.func @transform_0(%arg0: i32) -> (i32, i32) {
    %c0_i32 = arith.constant 0 : i32
    %c0_i32_0 = arith.constant 0 : i32
    %c0_i32_1 = arith.constant 0 : i32
    return %c0_i32, %c0_i32_0 : i32, i32
  }
  func.func @transform_1(%arg0: i32) -> (i32, i32) {
    %c0_i32 = arith.constant 0 : i32
    %c0_i32_0 = arith.constant 0 : i32
    %c0_i32_1 = arith.constant 0 : i32
    return %c0_i32, %c0_i32_0 : i32, i32
  }
  func.func @transform_2(%arg0: i32) -> (i32, i32) {
    %c0_i32 = arith.constant 0 : i32
    %c0_i32_0 = arith.constant 0 : i32
    %c0_i32_1 = arith.constant 0 : i32
    return %c0_i32, %c0_i32_0 : i32, i32
  }
  func.func @transform_3(%arg0: i32) -> (i32, i32) {
    %c0_i32 = arith.constant 0 : i32
    %c0_i32_0 = arith.constant 0 : i32
    %c0_i32_1 = arith.constant 0 : i32
    return %c0_i32, %c0_i32_0 : i32, i32
  }
  func.func @transform_4(%arg0: i32) -> (i32, i32) {
    %c0_i32 = arith.constant 0 : i32
    %c0_i32_0 = arith.constant 0 : i32
    %c0_i32_1 = arith.constant 0 : i32
    return %c0_i32, %c0_i32_0 : i32, i32
  }
  func.func @transform_5(%arg0: i32) -> (i32, i32, i32) {
    %c0_i32 = arith.constant 0 : i32
    %c0_i32_0 = arith.constant 0 : i32
    %c0_i32_1 = arith.constant 0 : i32
    %c0_i32_2 = arith.constant 0 : i32
    return %c0_i32, %c0_i32_0, %c0_i32_1 : i32, i32, i32
  }
  func.func @transform_6(%arg0: i32) -> (i32, i32, i32) {
    %c0_i32 = arith.constant 0 : i32
    %c0_i32_0 = arith.constant 0 : i32
    %c0_i32_1 = arith.constant 0 : i32
    %c0_i32_2 = arith.constant 0 : i32
    return %c0_i32, %c0_i32_0, %c0_i32_1 : i32, i32, i32
  }
  func.func @transform_7(%arg0: i32) -> (i32, i32) {
    %c0_i32 = arith.constant 0 : i32
    %c0_i32_0 = arith.constant 0 : i32
    %c0_i32_1 = arith.constant 0 : i32
    return %c0_i32, %c0_i32_0 : i32, i32
  }
  func.func @transform_8(%arg0: i32) -> (i32, i32) {
    %c0_i32 = arith.constant 0 : i32
    %c0_i32_0 = arith.constant 0 : i32
    %c0_i32_1 = arith.constant 0 : i32
    return %c0_i32, %c0_i32_0 : i32, i32
  }
  func.func @transform_9(%arg0: i32) -> (i32, i32) {
    %c0_i32 = arith.constant 0 : i32
    %c0_i32_0 = arith.constant 0 : i32
    %c0_i32_1 = arith.constant 0 : i32
    return %c0_i32, %c0_i32_0 : i32, i32
  }
  func.func @transform_10(%arg0: i32) -> (i32, i32) {
    %c0_i32 = arith.constant 0 : i32
    %c0_i32_0 = arith.constant 0 : i32
    %c0_i32_1 = arith.constant 0 : i32
    return %c0_i32, %c0_i32_0 : i32, i32
  }
}

</mosaic_0001>

<llo_original>
// kernel: mul.5
$region0: #{mul.5}
  #allocation0 [shape = 's32[1]{0}', space=sflag, size = 0x4, scoped, tag = 'scoped memory for mul.5']
  %s0 = inlined_call_operand.vmem [shape: f32[56], index: 0, kind: input, shape index: {}]
  %s1 = inlined_call_operand.vmem [shape: f32[56], index: 1, kind: input, shape index: {}]
  %s2 = inlined_call_operand.vmem [shape: f32[56], index: 2, kind: output, shape index: {}]
  %v3 = vld [vmem:[%s0] sm:$0x1]
  %v4 = vld [vmem:[%s1] sm:$0x1]
  %5 = xla_tuple %v3, %v4
  %6 = xla_tuple %5
  %v7 = vmul.f32 %v3, %v4
  %8 = xla_tuple %v7
  %9 = vst [vmem:[%s2] sm:$0x1] %v7

// kernel: sym_reg_layer2_apply.1
$region0: #{sym_reg_layer2_apply.1}
  #allocation0 [shape = 'u32[]', space=smem, size = 0x4, offset = 0x4, fixed_abs, tag = 'smem constant byte address 0x4 - core index']
  #allocation1 [shape = 'u32[144,128]{1,0:T(1,128)}', space=vmem, size = 0x12000, scoped, tag = 'internal scratch']
  %s0 = inlined_call_operand.vmem [shape: f32[16,8], index: 0, kind: input, shape index: {}]
  %s1 = inlined_call_operand.vmem [shape: f32[16,16], index: 1, kind: input, shape index: {}]
  %s2 = inlined_call_operand.vmem [shape: f32[16,16], index: 2, kind: input, shape index: {}]
  %s3 = inlined_call_operand.vmem [shape: f32[16,16], index: 3, kind: input, shape index: {}]
  %s4 = inlined_call_operand.vmem [shape: f32[8,32], index: 4, kind: input, shape index: {}]
  %s5 = inlined_call_operand.vmem [shape: f32[3,32,8], index: 5, kind: input, shape index: {}]
  %s6 = inlined_call_operand.vmem [shape: f32[3,8,8], index: 6, kind: input, shape index: {}]
  %s7 = inlined_call_operand.vmem [shape: f32[1,32], index: 7, kind: input, shape index: {}]
  %s8 = inlined_call_operand.vmem [shape: f32[1,8], index: 8, kind: input, shape index: {}]
  %s9 = inlined_call_operand.vmem [shape: f32[1,8], index: 9, kind: input, shape index: {}]
  %s10 = inlined_call_operand.vmem [shape: f32[16,8], index: 10, kind: output, shape index: {}]
  %s11 = sld [smem:[#allocation0]]
  $region50: #{sym_reg_layer2_apply.1} parent=0
    _
  %s13 = ssub.s32 1, %s11
  %s14 = scalar_select 0, %s13, %s11
  // Predicated region
  $region2: #{sym_reg_layer2_apply.1} parent=0 // pred_check
    _
  $region3: #{sym_reg_layer2_apply.1} parent=0 // pred_check_branch
    %16 = sbr.rel (0) target = $region5
  $region4: #{sym_reg_layer2_apply.1} parent=0 // pred_region
    _
  $region5: #{sym_reg_layer2_apply.1} parent=0 // pred_fallthru
    _
  // Predicated region
  $region6: #{sym_reg_layer2_apply.1} parent=0 // pred_check
    _
  $region7: #{sym_reg_layer2_apply.1} parent=0 // pred_check_branch
    %18 = sbr.rel (0) target = $region9
  $region8: #{sym_reg_layer2_apply.1} parent=0 // pred_region
    _
  $region9: #{sym_reg_layer2_apply.1} parent=0 // pred_fallthru
    _
  // Predicated region
  $region10: #{sym_reg_layer2_apply.1} parent=0 // pred_check
    _
  $region11: #{sym_reg_layer2_apply.1} parent=0 // pred_check_branch
    %20 = sbr.rel (0) target = $region13
  $region12: #{sym_reg_layer2_apply.1} parent=0 // pred_region
    _
  $region13: #{sym_reg_layer2_apply.1} parent=0 // pred_fallthru
    _
  // Predicated region
  $region14: #{sym_reg_layer2_apply.1} parent=0 // pred_check
    _
  $region15: #{sym_reg_layer2_apply.1} parent=0 // pred_check_branch
    %22 = sbr.rel (0) target = $region17
  $region16: #{sym_reg_layer2_apply.1} parent=0 // pred_region
    _
  $region17: #{sym_reg_layer2_apply.1} parent=0 // pred_fallthru
    _
  // Predicated region
  $region18: #{sym_reg_layer2_apply.1} parent=0 // pred_check
    _
  $region19: #{sym_reg_layer2_apply.1} parent=0 // pred_check_branch
    %24 = sbr.rel (0) target = $region21
  $region20: #{sym_reg_layer2_apply.1} parent=0 // pred_region
    _
  $region21: #{sym_reg_layer2_apply.1} parent=0 // pred_fallthru
    _
  // Predicated region
  $region22: #{sym_reg_layer2_apply.1} parent=0 // pred_check
    _
  $region23: #{sym_reg_layer2_apply.1} parent=0 // pred_check_branch
    %26 = sbr.rel (0) target = $region25
  $region24: #{sym_reg_layer2_apply.1} parent=0 // pred_region
    _
  $region25: #{sym_reg_layer2_apply.1} parent=0 // pred_fallthru
    _
  // Predicated region
  $region26: #{sym_reg_layer2_apply.1} parent=0 // pred_check
    _
  $region27: #{sym_reg_layer2_apply.1} parent=0 // pred_check_branch
    %28 = sbr.rel (0) target = $region29
  $region28: #{sym_reg_layer2_apply.1} parent=0 // pred_region
    _
  $region29: #{sym_reg_layer2_apply.1} parent=0 // pred_fallthru
    _
  // Predicated region
  $region30: #{sym_reg_layer2_apply.1} parent=0 // pred_check
    _
  $region31: #{sym_reg_layer2_apply.1} parent=0 // pred_check_branch
    %30 = sbr.rel (0) target = $region33
  $region32: #{sym_reg_layer2_apply.1} parent=0 // pred_region
    _
  $region33: #{sym_reg_layer2_apply.1} parent=0 // pred_fallthru
    _
  // Predicated region
  $region34: #{sym_reg_layer2_apply.1} parent=0 // pred_check
    _
  $region35: #{sym_reg_layer2_apply.1} parent=0 // pred_check_branch
    %32 = sbr.rel (0) target = $region37
  $region36: #{sym_reg_layer2_apply.1} parent=0 // pred_region
    _
  $region37: #{sym_reg_layer2_apply.1} parent=0 // pred_fallthru
    _
  // Predicated region
  $region38: #{sym_reg_layer2_apply.1} parent=0 // pred_check
    _
  $region39: #{sym_reg_layer2_apply.1} parent=0 // pred_check_branch
    %34 = sbr.rel (0) target = $region41
  $region40: #{sym_reg_layer2_apply.1} parent=0 // pred_region
    _
  $region41: #{sym_reg_layer2_apply.1} parent=0 // pred_fallthru
    _
  %v35 = vld [vmem:[%s0] sm:$0xff]
  %v36 = vld [vmem:[%s0 + $0x8] sm:$0xff]
  %v37 = vld [vmem:[%s4] sm:$0xff]
  %vm38 = vcmask 64512
  %v40 = vsel %vm38, %v35, 0
  %v43 = vsel %vm38, %v36, 0
  %45 = vmatprep.subr.mxu0 0.0
  %46 = vmatpush1.msra.mxu0 %v37
  %47 = vmatprep.subr.mxu0 0.0
  %48 = vmatpush1.msra.mxu0 0.0
  %49 = vmatprep.subr.mxu0 0.0
  %50 = vmatpush1.msra.mxu0 0.0
  %51 = vmatprep.subr.mxu0 0.0
  %52 = vmatpush1.msra.mxu0 0.0
  %53 = vmatprep.subr.mxu0 0.0
  %54 = vmatpush1.msra.mxu0 0.0
  %55 = vmatprep.subr.mxu0 0.0
  %56 = vmatpush1.msra.mxu0 0.0
  %57 = vmatprep.subr.mxu0 0.0
  %58 = vmatpush1.msra.mxu0 0.0
  %59 = vmatprep.subr.mxu0 0.0
  %60 = vmatpush1.msra.mxu0 0.0
  %61 = vmatprep.subr.mxu0 0.0
  %62 = vmatpush1.msra.mxu0 0.0
  %63 = vmatprep.subr.mxu0 0.0
  %64 = vmatpush1.msra.mxu0 0.0
  %65 = vmatprep.subr.mxu0 0.0
  %66 = vmatpush1.msra.mxu0 0.0
  %67 = vmatprep.subr.mxu0 0.0
  %68 = vmatpush1.msra.mxu0 0.0
  %69 = vmatprep.subr.mxu0 0.0
  %70 = vmatpush1.msra.mxu0 0.0
  %71 = vmatprep.subr.mxu0 0.0
  %72 = vmatpush1.msra.mxu0 0.0
  %73 = vmatprep.subr.mxu0 0.0
  %74 = vmatpush1.msra.mxu0 0.0
  %75 = vmatprep.subr.mxu0 0.0
  %76 = vmatpush1.msra.mxu0 0.0
  %77 = vmatprep.subr.mxu0 0.0
  %78 = vmatpush1.msra.mxu0 0.0
  %79 = vmatprep.subr.mxu0 0.0
  %80 = vmatpush1.msra.mxu0 0.0
  %81 = vmatprep.subr.mxu0 0.0
  %82 = vmatpush1.msra.mxu0 0.0
  %83 = vmatprep.subr.mxu0 0.0
  %84 = vmatpush1.msra.mxu0 0.0
  %85 = vmatprep.subr.mxu0 0.0
  %86 = vmatpush1.msra.mxu0 0.0
  %87 = vmatprep.subr.mxu0 0.0
  %88 = vmatpush1.msra.mxu0 0.0
  %89 = vmatprep.subr.mxu0 0.0
  %90 = vmatpush1.msra.mxu0 0.0
  %91 = vmatprep.subr.mxu0 0.0
  %92 = vmatpush1.msra.mxu0 0.0
  %93 = vmatprep.subr.mxu0 0.0
  %94 = vmatpush1.msra.mxu0 0.0
  %95 = vmatprep.subr.mxu0 0.0
  %96 = vmatpush1.msra.mxu0 0.0
  %97 = vmatprep.subr.mxu0 0.0
  %98 = vmatpush1.msra.mxu0 0.0
  %99 = vmatprep.subr.mxu0 0.0
  %100 = vmatpush1.msra.mxu0 0.0
  %101 = vmatprep.subr.mxu0 0.0
  %102 = vmatpush1.msra.mxu0 0.0
  %103 = vmatprep.subr.mxu0 0.0
  %104 = vmatpush1.msra.mxu0 0.0
  %105 = vmatprep.subr.mxu0 0.0
  %106 = vmatpush1.msra.mxu0 0.0
  %107 = vmatprep.subr.mxu0 0.0
  %108 = vmatpush1.msra.mxu0 0.0
  %109 = vmatprep.mubr.f32.mxu0 0.0
  %110 = vmatmul.mubr.f32.gmra.mrb[0].mxu0 %v40
  %v111 = vpop.f32.mrb[0].mxu0
  %v112 = vadd.f32 0.0, %v111
  %v113 = vpop.f32.mrb[0].mxu0
  %114 = vmatprep.mubr.f32.mxu0 0.0
  %115 = vmatmul.mubr.f32.gmra.mrb[0].mxu0 %v43
  %v116 = vpop.f32.mrb[0].mxu0
  %v117 = vadd.f32 0.0, %v116
  %v118 = vpop.f32.mrb[0].mxu0
  %119 = vdwg.mxu0
  %v120 = vld [vmem:[%s7] sm:$0x1]
  %v121 = vld [vmem:[%s8] sm:$0x1]
  %v122 = vld [vmem:[%s1] sm:$0xff]
  %v123 = vld [vmem:[%s1 + $0x8] sm:$0xff]
  %v124 = vld [vmem:[%s2] sm:$0xff]
  %v125 = vld [vmem:[%s2 + $0x8] sm:$0xff]
  %v126 = vld [vmem:[%s3] sm:$0xff]
  %v127 = vld [vmem:[%s3 + $0x8] sm:$0xff]
  %v129 = vlaneseq
  %v130 = vshrl.u32 %v129, 7
  %v131 = vsub.s32 0, %v130
  %v132 = vrot.slane %v120, %v131
  %vm134 = vcmask 130048
  %v136 = vsel %vm134, %v122, 0
  %v139 = vsel %vm134, %v123, 0
  %141 = vmatprep.subr.mxu0 0.0
  %142 = vmatpush1.msra.mxu0 %v112
  %143 = vmatprep.subr.mxu0 0.0
  %144 = vmatpush1.msra.mxu0 %v117
  %145 = vmatprep.subr.mxu0 0.0
  %146 = vmatpush1.msra.mxu0 0.0
  %147 = vmatprep.subr.mxu0 0.0
  %148 = vmatpush1.msra.mxu0 0.0
  %149 = vmatprep.subr.mxu0 0.0
  %150 = vmatpush1.msra.mxu0 0.0
  %151 = vmatprep.subr.mxu0 0.0
  %152 = vmatpush1.msra.mxu0 0.0
  %153 = vmatprep.subr.mxu0 0.0
  %154 = vmatpush1.msra.mxu0 0.0
  %155 = vmatprep.subr.mxu0 0.0
  %156 = vmatpush1.msra.mxu0 0.0
  %157 = vmatprep.subr.mxu0 0.0
  %158 = vmatpush1.msra.mxu0 0.0
  %159 = vmatprep.subr.mxu0 0.0
  %160 = vmatpush1.msra.mxu0 0.0
  %161 = vmatprep.subr.mxu0 0.0
  %162 = vmatpush1.msra.mxu0 0.0
  %163 = vmatprep.subr.mxu0 0.0
  %164 = vmatpush1.msra.mxu0 0.0
  %165 = vmatprep.subr.mxu0 0.0
  %166 = vmatpush1.msra.mxu0 0.0
  %167 = vmatprep.subr.mxu0 0.0
  %168 = vmatpush1.msra.mxu0 0.0
  %169 = vmatprep.subr.mxu0 0.0
  %170 = vmatpush1.msra.mxu0 0.0
  %171 = vmatprep.subr.mxu0 0.0
  %172 = vmatpush1.msra.mxu0 0.0
  %173 = vmatprep.subr.mxu0 0.0
  %174 = vmatpush1.msra.mxu0 0.0
  %175 = vmatprep.subr.mxu0 0.0
  %176 = vmatpush1.msra.mxu0 0.0
  %177 = vmatprep.subr.mxu0 0.0
  %178 = vmatpush1.msra.mxu0 0.0
  %179 = vmatprep.subr.mxu0 0.0
  %180 = vmatpush1.msra.mxu0 0.0
  %181 = vmatprep.subr.mxu0 0.0
  %182 = vmatpush1.msra.mxu0 0.0
  %183 = vmatprep.subr.mxu0 0.0
  %184 = vmatpush1.msra.mxu0 0.0
  %185 = vmatprep.subr.mxu0 0.0
  %186 = vmatpush1.msra.mxu0 0.0
  %187 = vmatprep.subr.mxu0 0.0
  %188 = vmatpush1.msra.mxu0 0.0
  %189 = vmatprep.subr.mxu0 0.0
  %190 = vmatpush1.msra.mxu0 0.0
  %191 = vmatprep.subr.mxu0 0.0
  %192 = vmatpush1.msra.mxu0 0.0
  %193 = vmatprep.subr.mxu0 0.0
  %194 = vmatpush1.msra.mxu0 0.0
  %195 = vmatprep.subr.mxu0 0.0
  %196 = vmatpush1.msra.mxu0 0.0
  %197 = vmatprep.subr.mxu0 0.0
  %198 = vmatpush1.msra.mxu0 0.0
  %199 = vmatprep.subr.mxu0 0.0
  %200 = vmatpush1.msra.mxu0 0.0
  %201 = vmatprep.subr.mxu0 0.0
  %202 = vmatpush1.msra.mxu0 0.0
  %203 = vmatprep.subr.mxu0 0.0
  %204 = vmatpush1.msra.mxu0 0.0
  %205 = vmatprep.mubr.f32.mxu0 0.0
  %206 = vmatmul.mubr.f32.gmra.mrb[0].mxu0 %v136
  %v207 = vpop.f32.mrb[0].mxu0
  %v208 = vadd.f32 %v132, %v207
  %v209 = vpop.f32.mrb[0].mxu0
  %210 = vmatprep.mubr.f32.mxu0 0.0
  %211 = vmatmul.mubr.f32.gmra.mrb[0].mxu0 %v139
  %v212 = vpop.f32.mrb[0].mxu0
  %v213 = vadd.f32 %v132, %v212
  %v214 = vpop.f32.mrb[0].mxu0
  %215 = vdwg.mxu0
  %v216 = vmax.f32 %v208, 0.0
  %v217 = vmax.f32 %v213, 0.0
  %v218 = vld [vmem:[%s5] sm:$0xff]
  %v219 = vld [vmem:[%s5 + $0x8] sm:$0xff]
  %v220 = vld [vmem:[%s5 + $0x10] sm:$0xff]
  %v221 = vld [vmem:[%s5 + $0x18] sm:$0xff]
  %v223 = vsel %vm134, %v124, 0
  %v226 = vsel %vm134, %v125, 0
  %228 = vmatprep.subr.mxu0 0.0
  %229 = vmatpush1.msra.mxu0 %v112
  %230 = vmatprep.subr.mxu0 0.0
  %231 = vmatpush1.msra.mxu0 %v117
  %232 = vmatprep.subr.mxu0 0.0
  %233 = vmatpush1.msra.mxu0 0.0
  %234 = vmatprep.subr.mxu0 0.0
  %235 = vmatpush1.msra.mxu0 0.0
  %236 = vmatprep.subr.mxu0 0.0
  %237 = vmatpush1.msra.mxu0 0.0
  %238 = vmatprep.subr.mxu0 0.0
  %239 = vmatpush1.msra.mxu0 0.0
  %240 = vmatprep.subr.mxu0 0.0
  %241 = vmatpush1.msra.mxu0 0.0
  %242 = vmatprep.subr.mxu0 0.0
  %243 = vmatpush1.msra.mxu0 0.0
  %244 = vmatprep.subr.mxu0 0.0
  %245 = vmatpush1.msra.mxu0 0.0
  %246 = vmatprep.subr.mxu0 0.0
  %247 = vmatpush1.msra.mxu0 0.0
  %248 = vmatprep.subr.mxu0 0.0
  %249 = vmatpush1.msra.mxu0 0.0
  %250 = vmatprep.subr.mxu0 0.0
  %251 = vmatpush1.msra.mxu0 0.0
  %252 = vmatprep.subr.mxu0 0.0
  %253 = vmatpush1.msra.mxu0 0.0
  %254 = vmatprep.subr.mxu0 0.0
  %255 = vmatpush1.msra.mxu0 0.0
  %256 = vmatprep.subr.mxu0 0.0
  %257 = vmatpush1.msra.mxu0 0.0
  %258 = vmatprep.subr.mxu0 0.0
  %259 = vmatpush1.msra.mxu0 0.0
  %260 = vmatprep.subr.mxu0 0.0
  %261 = vmatpush1.msra.mxu0 0.0
  %262 = vmatprep.subr.mxu0 0.0
  %263 = vmatpush1.msra.mxu0 0.0
  %264 = vmatprep.subr.mxu0 0.0
  %265 = vmatpush1.msra.mxu0 0.0
  %266 = vmatprep.subr.mxu0 0.0
  %267 = vmatpush1.msra.mxu0 0.0
  %268 = vmatprep.subr.mxu0 0.0
  %269 = vmatpush1.msra.mxu0 0.0
  %270 = vmatprep.subr.mxu0 0.0
  %271 = vmatpush1.msra.mxu0 0.0
  %272 = vmatprep.subr.mxu0 0.0
  %273 = vmatpush1.msra.mxu0 0.0
  %274 = vmatprep.subr.mxu0 0.0
  %275 = vmatpush1.msra.mxu0 0.0
  %276 = vmatprep.subr.mxu0 0.0
  %277 = vmatpush1.msra.mxu0 0.0
  %278 = vmatprep.subr.mxu0 0.0
  %279 = vmatpush1.msra.mxu0 0.0
  %280 = vmatprep.subr.mxu0 0.0
  %281 = vmatpush1.msra.mxu0 0.0
  %282 = vmatprep.subr.mxu0 0.0
  %283 = vmatpush1.msra.mxu0 0.0
  %284 = vmatprep.subr.mxu0 0.0
  %285 = vmatpush1.msra.mxu0 0.0
  %286 = vmatprep.subr.mxu0 0.0
  %287 = vmatpush1.msra.mxu0 0.0
  %288 = vmatprep.subr.mxu0 0.0
  %289 = vmatpush1.msra.mxu0 0.0
  %290 = vmatprep.subr.mxu0 0.0
  %291 = vmatpush1.msra.mxu0 0.0
  %292 = vmatprep.mubr.f32.mxu0 0.0
  %293 = vmatmul.mubr.f32.gmra.mrb[0].mxu0 %v223
  %v294 = vpop.f32.mrb[0].mxu0
  %v295 = vadd.f32 %v132, %v294
  %v296 = vpop.f32.mrb[0].mxu0
  %297 = vmatprep.mubr.f32.mxu0 0.0
  %298 = vmatmul.mubr.f32.gmra.mrb[0].mxu0 %v226
  %v299 = vpop.f32.mrb[0].mxu0
  %v300 = vadd.f32 %v132, %v299
  %v301 = vpop.f32.mrb[0].mxu0
  %302 = vdwg.mxu0
  %v303 = vmax.f32 %v295, 0.0
  %v304 = vmax.f32 %v300, 0.0
  %s305 = scalar_lea.vmem %s5, 32
  %v306 = vld [vmem:[%s305] sm:$0xff]
  %v307 = vld [vmem:[%s305 + $0x8] sm:$0xff]
  %v308 = vld [vmem:[%s305 + $0x10] sm:$0xff]
  %v309 = vld [vmem:[%s305 + $0x18] sm:$0xff]
  %vm310 = vcmask 261120
  %v312 = vsel %vm310, %v303, 0
  %v315 = vsel %vm310, %v304, 0
  %317 = vmatprep.subr.mxu0 0.0
  %318 = vmatpush1.msra.mxu0 %v306
  %319 = vmatprep.subr.mxu0 0.0
  %320 = vmatpush1.msra.mxu0 %v307
  %321 = vmatprep.subr.mxu0 0.0
  %322 = vmatpush1.msra.mxu0 %v308
  %323 = vmatprep.subr.mxu0 0.0
  %324 = vmatpush1.msra.mxu0 %v309
  %325 = vmatprep.subr.mxu0 0.0
  %326 = vmatpush1.msra.mxu0 0.0
  %327 = vmatprep.subr.mxu0 0.0
  %328 = vmatpush1.msra.mxu0 0.0
  %329 = vmatprep.subr.mxu0 0.0
  %330 = vmatpush1.msra.mxu0 0.0
  %331 = vmatprep.subr.mxu0 0.0
  %332 = vmatpush1.msra.mxu0 0.0
  %333 = vmatprep.subr.mxu0 0.0
  %334 = vmatpush1.msra.mxu0 0.0
  %335 = vmatprep.subr.mxu0 0.0
  %336 = vmatpush1.msra.mxu0 0.0
  %337 = vmatprep.subr.mxu0 0.0
  %338 = vmatpush1.msra.mxu0 0.0
  %339 = vmatprep.subr.mxu0 0.0
  %340 = vmatpush1.msra.mxu0 0.0
  %341 = vmatprep.subr.mxu0 0.0
  %342 = vmatpush1.msra.mxu0 0.0
  %343 = vmatprep.subr.mxu0 0.0
  %344 = vmatpush1.msra.mxu0 0.0
  %345 = vmatprep.subr.mxu0 0.0
  %346 = vmatpush1.msra.mxu0 0.0
  %347 = vmatprep.subr.mxu0 0.0
  %348 = vmatpush1.msra.mxu0 0.0
  %349 = vmatprep.subr.mxu0 0.0
  %350 = vmatpush1.msra.mxu0 0.0
  %351 = vmatprep.subr.mxu0 0.0
  %352 = vmatpush1.msra.mxu0 0.0
  %353 = vmatprep.subr.mxu0 0.0
  %354 = vmatpush1.msra.mxu0 0.0
  %355 = vmatprep.subr.mxu0 0.0
  %356 = vmatpush1.msra.mxu0 0.0
  %357 = vmatprep.subr.mxu0 0.0
  %358 = vmatpush1.msra.mxu0 0.0
  %359 = vmatprep.subr.mxu0 0.0
  %360 = vmatpush1.msra.mxu0 0.0
  %361 = vmatprep.subr.mxu0 0.0
  %362 = vmatpush1.msra.mxu0 0.0
  %363 = vmatprep.subr.mxu0 0.0
  %364 = vmatpush1.msra.mxu0 0.0
  %365 = vmatprep.subr.mxu0 0.0
  %366 = vmatpush1.msra.mxu0 0.0
  %367 = vmatprep.subr.mxu0 0.0
  %368 = vmatpush1.msra.mxu0 0.0
  %369 = vmatprep.subr.mxu0 0.0
  %370 = vmatpush1.msra.mxu0 0.0
  %371 = vmatprep.subr.mxu0 0.0
  %372 = vmatpush1.msra.mxu0 0.0
  %373 = vmatprep.subr.mxu0 0.0
  %374 = vmatpush1.msra.mxu0 0.0
  %375 = vmatprep.subr.mxu0 0.0
  %376 = vmatpush1.msra.mxu0 0.0
  %377 = vmatprep.subr.mxu0 0.0
  %378 = vmatpush1.msra.mxu0 0.0
  %379 = vmatprep.subr.mxu0 0.0
  %380 = vmatpush1.msra.mxu0 0.0
  %381 = vmatprep.mubr.f32.mxu0 0.0
  %382 = vmatmul.mubr.f32.gmra.mrb[0].mxu0 %v312
  %v383 = vpop.f32.mrb[0].mxu0
  %v384 = vadd.f32 0.0, %v383
  %v385 = vpop.f32.mrb[0].mxu0
  %386 = vmatprep.mubr.f32.mxu0 0.0
  %387 = vmatmul.mubr.f32.gmra.mrb[0].mxu0 %v315
  %v388 = vpop.f32.mrb[0].mxu0
  %v389 = vadd.f32 0.0, %v388
  %v390 = vpop.f32.mrb[0].mxu0
  %391 = vdwg.mxu0
  %v393 = vsel %vm310, %v216, 0
  %v396 = vsel %vm310, %v217, 0
  %398 = vmatprep.subr.mxu0 0.0
  %399 = vmatpush1.msra.mxu0 %v218
  %400 = vmatprep.subr.mxu0 0.0
  %401 = vmatpush1.msra.mxu0 %v219
  %402 = vmatprep.subr.mxu0 0.0
  %403 = vmatpush1.msra.mxu0 %v220
  %404 = vmatprep.subr.mxu0 0.0
  %405 = vmatpush1.msra.mxu0 %v221
  %406 = vmatprep.subr.mxu0 0.0
  %407 = vmatpush1.msra.mxu0 0.0
  %408 = vmatprep.subr.mxu0 0.0
  %409 = vmatpush1.msra.mxu0 0.0
  %410 = vmatprep.subr.mxu0 0.0
  %411 = vmatpush1.msra.mxu0 0.0
  %412 = vmatprep.subr.mxu0 0.0
  %413 = vmatpush1.msra.mxu0 0.0
  %414 = vmatprep.subr.mxu0 0.0
  %415 = vmatpush1.msra.mxu0 0.0
  %416 = vmatprep.subr.mxu0 0.0
  %417 = vmatpush1.msra.mxu0 0.0
  %418 = vmatprep.subr.mxu0 0.0
  %419 = vmatpush1.msra.mxu0 0.0
  %420 = vmatprep.subr.mxu0 0.0
  %421 = vmatpush1.msra.mxu0 0.0
  %422 = vmatprep.subr.mxu0 0.0
  %423 = vmatpush1.msra.mxu0 0.0
  %424 = vmatprep.subr.mxu0 0.0
  %425 = vmatpush1.msra.mxu0 0.0
  %426 = vmatprep.subr.mxu0 0.0
  %427 = vmatpush1.msra.mxu0 0.0
  %428 = vmatprep.subr.mxu0 0.0
  %429 = vmatpush1.msra.mxu0 0.0
  %430 = vmatprep.subr.mxu0 0.0
  %431 = vmatpush1.msra.mxu0 0.0
  %432 = vmatprep.subr.mxu0 0.0
  %433 = vmatpush1.msra.mxu0 0.0
  %434 = vmatprep.subr.mxu0 0.0
  %435 = vmatpush1.msra.mxu0 0.0
  %436 = vmatprep.subr.mxu0 0.0
  %437 = vmatpush1.msra.mxu0 0.0
  %438 = vmatprep.subr.mxu0 0.0
  %439 = vmatpush1.msra.mxu0 0.0
  %440 = vmatprep.subr.mxu0 0.0
  %441 = vmatpush1.msra.mxu0 0.0
  %442 = vmatprep.subr.mxu0 0.0
  %443 = vmatpush1.msra.mxu0 0.0
  %444 = vmatprep.subr.mxu0 0.0
  %445 = vmatpush1.msra.mxu0 0.0
  %446 = vmatprep.subr.mxu0 0.0
  %447 = vmatpush1.msra.mxu0 0.0
  %448 = vmatprep.subr.mxu0 0.0
  %449 = vmatpush1.msra.mxu0 0.0
  %450 = vmatprep.subr.mxu0 0.0
  %451 = vmatpush1.msra.mxu0 0.0
  %452 = vmatprep.subr.mxu0 0.0
  %453 = vmatpush1.msra.mxu0 0.0
  %454 = vmatprep.subr.mxu0 0.0
  %455 = vmatpush1.msra.mxu0 0.0
  %456 = vmatprep.subr.mxu0 0.0
  %457 = vmatpush1.msra.mxu0 0.0
  %458 = vmatprep.subr.mxu0 0.0
  %459 = vmatpush1.msra.mxu0 0.0
  %460 = vmatprep.subr.mxu0 0.0
  %461 = vmatpush1.msra.mxu0 0.0
  %462 = vmatprep.mubr.f32.mxu0 0.0
  %463 = vmatmul.mubr.f32.gmra.mrb[0].mxu0 %v393
  %v464 = vpop.f32.mrb[0].mxu0
  %v465 = vadd.f32 %v384, %v464
  %v466 = vpop.f32.mrb[0].mxu0
  %467 = vmatprep.mubr.f32.mxu0 0.0
  %468 = vmatmul.mubr.f32.gmra.mrb[0].mxu0 %v396
  %v469 = vpop.f32.mrb[0].mxu0
  %v470 = vadd.f32 %v389, %v469
  %v471 = vpop.f32.mrb[0].mxu0
  %472 = vdwg.mxu0
  %v474 = vsel %vm134, %v126, 0
  %v477 = vsel %vm134, %v127, 0
  %479 = vmatprep.subr.mxu0 0.0
  %480 = vmatpush1.msra.mxu0 %v112
  %481 = vmatprep.subr.mxu0 0.0
  %482 = vmatpush1.msra.mxu0 %v117
  %483 = vmatprep.subr.mxu0 0.0
  %484 = vmatpush1.msra.mxu0 0.0
  %485 = vmatprep.subr.mxu0 0.0
  %486 = vmatpush1.msra.mxu0 0.0
  %487 = vmatprep.subr.mxu0 0.0
  %488 = vmatpush1.msra.mxu0 0.0
  %489 = vmatprep.subr.mxu0 0.0
  %490 = vmatpush1.msra.mxu0 0.0
  %491 = vmatprep.subr.mxu0 0.0
  %492 = vmatpush1.msra.mxu0 0.0
  %493 = vmatprep.subr.mxu0 0.0
  %494 = vmatpush1.msra.mxu0 0.0
  %495 = vmatprep.subr.mxu0 0.0
  %496 = vmatpush1.msra.mxu0 0.0
  %497 = vmatprep.subr.mxu0 0.0
  %498 = vmatpush1.msra.mxu0 0.0
  %499 = vmatprep.subr.mxu0 0.0
  %500 = vmatpush1.msra.mxu0 0.0
  %501 = vmatprep.subr.mxu0 0.0
  %502 = vmatpush1.msra.mxu0 0.0
  %503 = vmatprep.subr.mxu0 0.0
  %504 = vmatpush1.msra.mxu0 0.0
  %505 = vmatprep.subr.mxu0 0.0
  %506 = vmatpush1.msra.mxu0 0.0
  %507 = vmatprep.subr.mxu0 0.0
  %508 = vmatpush1.msra.mxu0 0.0
  %509 = vmatprep.subr.mxu0 0.0
  %510 = vmatpush1.msra.mxu0 0.0
  %511 = vmatprep.subr.mxu0 0.0
  %512 = vmatpush1.msra.mxu0 0.0
  %513 = vmatprep.subr.mxu0 0.0
  %514 = vmatpush1.msra.mxu0 0.0
  %515 = vmatprep.subr.mxu0 0.0
  %516 = vmatpush1.msra.mxu0 0.0
  %517 = vmatprep.subr.mxu0 0.0
  %518 = vmatpush1.msra.mxu0 0.0
  %519 = vmatprep.subr.mxu0 0.0
  %520 = vmatpush1.msra.mxu0 0.0
  %521 = vmatprep.subr.mxu0 0.0
  %522 = vmatpush1.msra.mxu0 0.0
  %523 = vmatprep.subr.mxu0 0.0
  %524 = vmatpush1.msra.mxu0 0.0
  %525 = vmatprep.subr.mxu0 0.0
  %526 = vmatpush1.msra.mxu0 0.0
  %527 = vmatprep.subr.mxu0 0.0
  %528 = vmatpush1.msra.mxu0 0.0
  %529 = vmatprep.subr.mxu0 0.0
  %530 = vmatpush1.msra.mxu0 0.0
  %531 = vmatprep.subr.mxu0 0.0
  %532 = vmatpush1.msra.mxu0 0.0
  %533 = vmatprep.subr.mxu0 0.0
  %534 = vmatpush1.msra.mxu0 0.0
  %535 = vmatprep.subr.mxu0 0.0
  %536 = vmatpush1.msra.mxu0 0.0
  %537 = vmatprep.subr.mxu0 0.0
  %538 = vmatpush1.msra.mxu0 0.0
  %539 = vmatprep.subr.mxu0 0.0
  %540 = vmatpush1.msra.mxu0 0.0
  %541 = vmatprep.subr.mxu0 0.0
  %542 = vmatpush1.msra.mxu0 0.0
  %543 = vmatprep.mubr.f32.mxu0 0.0
  %544 = vmatmul.mubr.f32.gmra.mrb[0].mxu0 %v474
  %v545 = vpop.f32.mrb[0].mxu0
  %v546 = vadd.f32 %v132, %v545
  %v547 = vpop.f32.mrb[0].mxu0
  %548 = vmatprep.mubr.f32.mxu0 0.0
  %549 = vmatmul.mubr.f32.gmra.mrb[0].mxu0 %v477
  %v550 = vpop.f32.mrb[0].mxu0
  %v551 = vadd.f32 %v132, %v550
  %v552 = vpop.f32.mrb[0].mxu0
  %553 = vdwg.mxu0
  %v554 = vmax.f32 %v546, 0.0
  %v555 = vmax.f32 %v551, 0.0
  %s556 = scalar_lea.vmem %s5, 64
  %v557 = vld [vmem:[%s556] sm:$0xff]
  %v558 = vld [vmem:[%s556 + $0x8] sm:$0xff]
  %v559 = vld [vmem:[%s556 + $0x10] sm:$0xff]
  %v560 = vld [vmem:[%s556 + $0x18] sm:$0xff]
  %v562 = vsel %vm310, %v554, 0
  %v565 = vsel %vm310, %v555, 0
  %567 = vmatprep.subr.mxu0 0.0
  %568 = vmatpush1.msra.mxu0 %v557
  %569 = vmatprep.subr.mxu0 0.0
  %570 = vmatpush1.msra.mxu0 %v558
  %571 = vmatprep.subr.mxu0 0.0
  %572 = vmatpush1.msra.mxu0 %v559
  %573 = vmatprep.subr.mxu0 0.0
  %574 = vmatpush1.msra.mxu0 %v560
  %575 = vmatprep.subr.mxu0 0.0
  %576 = vmatpush1.msra.mxu0 0.0
  %577 = vmatprep.subr.mxu0 0.0
  %578 = vmatpush1.msra.mxu0 0.0
  %579 = vmatprep.subr.mxu0 0.0
  %580 = vmatpush1.msra.mxu0 0.0
  %581 = vmatprep.subr.mxu0 0.0
  %582 = vmatpush1.msra.mxu0 0.0
  %583 = vmatprep.subr.mxu0 0.0
  %584 = vmatpush1.msra.mxu0 0.0
  %585 = vmatprep.subr.mxu0 0.0
  %586 = vmatpush1.msra.mxu0 0.0
  %587 = vmatprep.subr.mxu0 0.0
  %588 = vmatpush1.msra.mxu0 0.0
  %589 = vmatprep.subr.mxu0 0.0
  %590 = vmatpush1.msra.mxu0 0.0
  %591 = vmatprep.subr.mxu0 0.0
  %592 = vmatpush1.msra.mxu0 0.0
  %593 = vmatprep.subr.mxu0 0.0
  %594 = vmatpush1.msra.mxu0 0.0
  %595 = vmatprep.subr.mxu0 0.0
  %596 = vmatpush1.msra.mxu0 0.0
  %597 = vmatprep.subr.mxu0 0.0
  %598 = vmatpush1.msra.mxu0 0.0
  %599 = vmatprep.subr.mxu0 0.0
  %600 = vmatpush1.msra.mxu0 0.0
  %601 = vmatprep.subr.mxu0 0.0
  %602 = vmatpush1.msra.mxu0 0.0
  %603 = vmatprep.subr.mxu0 0.0
  %604 = vmatpush1.msra.mxu0 0.0
  %605 = vmatprep.subr.mxu0 0.0
  %606 = vmatpush1.msra.mxu0 0.0
  %607 = vmatprep.subr.mxu0 0.0
  %608 = vmatpush1.msra.mxu0 0.0
  %609 = vmatprep.subr.mxu0 0.0
  %610 = vmatpush1.msra.mxu0 0.0
  %611 = vmatprep.subr.mxu0 0.0
  %612 = vmatpush1.msra.mxu0 0.0
  %613 = vmatprep.subr.mxu0 0.0
  %614 = vmatpush1.msra.mxu0 0.0
  %615 = vmatprep.subr.mxu0 0.0
  %616 = vmatpush1.msra.mxu0 0.0
  %617 = vmatprep.subr.mxu0 0.0
  %618 = vmatpush1.msra.mxu0 0.0
  %619 = vmatprep.subr.mxu0 0.0
  %620 = vmatpush1.msra.mxu0 0.0
  %621 = vmatprep.subr.mxu0 0.0
  %622 = vmatpush1.msra.mxu0 0.0
  %623 = vmatprep.subr.mxu0 0.0
  %624 = vmatpush1.msra.mxu0 0.0
  %625 = vmatprep.subr.mxu0 0.0
  %626 = vmatpush1.msra.mxu0 0.0
  %627 = vmatprep.subr.mxu0 0.0
  %628 = vmatpush1.msra.mxu0 0.0
  %629 = vmatprep.subr.mxu0 0.0
  %630 = vmatpush1.msra.mxu0 0.0
  %631 = vmatprep.mubr.f32.mxu0 0.0
  %632 = vmatmul.mubr.f32.gmra.mrb[0].mxu0 %v562
  %v633 = vpop.f32.mrb[0].mxu0
  %v634 = vadd.f32 0.0, %v633
  %v635 = vpop.f32.mrb[0].mxu0
  %636 = vmatprep.mubr.f32.mxu0 0.0
  %637 = vmatmul.mubr.f32.gmra.mrb[0].mxu0 %v565
  %v638 = vpop.f32.mrb[0].mxu0
  %v639 = vadd.f32 0.0, %v638
  %v640 = vpop.f32.mrb[0].mxu0
  %641 = vdwg.mxu0
  %v642 = vadd.f32 %v465, %v634
  %v643 = vadd.f32 %v470, %v639
  %v645 = vlaneseq
  %v646 = vshrl.u32 %v645, 7
  %v647 = vsub.s32 0, %v646
  %v648 = vrot.slane %v121, %v647
  %650 = vmatprep.subr.mxu0 0.0
  %651 = vmatpush1.msra.mxu0 %v642
  %652 = vmatprep.subr.mxu0 0.0
  %653 = vmatpush1.msra.mxu0 %v643
  %654 = vmatprep.subr.mxu0 0.0
  %655 = vmatpush1.msra.mxu0 0.0
  %656 = vmatprep.subr.mxu0 0.0
  %657 = vmatpush1.msra.mxu0 0.0
  %658 = vmatprep.subr.mxu0 0.0
  %659 = vmatpush1.msra.mxu0 0.0
  %660 = vmatprep.subr.mxu0 0.0
  %661 = vmatpush1.msra.mxu0 0.0
  %662 = vmatprep.subr.mxu0 0.0
  %663 = vmatpush1.msra.mxu0 0.0
  %664 = vmatprep.subr.mxu0 0.0
  %665 = vmatpush1.msra.mxu0 0.0
  %666 = vmatprep.subr.mxu0 0.0
  %667 = vmatpush1.msra.mxu0 0.0
  %668 = vmatprep.subr.mxu0 0.0
  %669 = vmatpush1.msra.mxu0 0.0
  %670 = vmatprep.subr.mxu0 0.0
  %671 = vmatpush1.msra.mxu0 0.0
  %672 = vmatprep.subr.mxu0 0.0
  %673 = vmatpush1.msra.mxu0 0.0
  %674 = vmatprep.subr.mxu0 0.0
  %675 = vmatpush1.msra.mxu0 0.0
  %676 = vmatprep.subr.mxu0 0.0
  %677 = vmatpush1.msra.mxu0 0.0
  %678 = vmatprep.subr.mxu0 0.0
  %679 = vmatpush1.msra.mxu0 0.0
  %680 = vmatprep.subr.mxu0 0.0
  %681 = vmatpush1.msra.mxu0 0.0
  %682 = vmatprep.subr.mxu0 0.0
  %683 = vmatpush1.msra.mxu0 0.0
  %684 = vmatprep.subr.mxu0 0.0
  %685 = vmatpush1.msra.mxu0 0.0
  %686 = vmatprep.subr.mxu0 0.0
  %687 = vmatpush1.msra.mxu0 0.0
  %688 = vmatprep.subr.mxu0 0.0
  %689 = vmatpush1.msra.mxu0 0.0
  %690 = vmatprep.subr.mxu0 0.0
  %691 = vmatpush1.msra.mxu0 0.0
  %692 = vmatprep.subr.mxu0 0.0
  %693 = vmatpush1.msra.mxu0 0.0
  %694 = vmatprep.subr.mxu0 0.0
  %695 = vmatpush1.msra.mxu0 0.0
  %696 = vmatprep.subr.mxu0 0.0
  %697 = vmatpush1.msra.mxu0 0.0
  %698 = vmatprep.subr.mxu0 0.0
  %699 = vmatpush1.msra.mxu0 0.0
  %700 = vmatprep.subr.mxu0 0.0
  %701 = vmatpush1.msra.mxu0 0.0
  %702 = vmatprep.subr.mxu0 0.0
  %703 = vmatpush1.msra.mxu0 0.0
  %704 = vmatprep.subr.mxu0 0.0
  %705 = vmatpush1.msra.mxu0 0.0
  %706 = vmatprep.subr.mxu0 0.0
  %707 = vmatpush1.msra.mxu0 0.0
  %708 = vmatprep.subr.mxu0 0.0
  %709 = vmatpush1.msra.mxu0 0.0
  %710 = vmatprep.subr.mxu0 0.0
  %711 = vmatpush1.msra.mxu0 0.0
  %712 = vmatprep.subr.mxu0 0.0
  %713 = vmatpush1.msra.mxu0 0.0
  %714 = vmatprep.mubr.f32.mxu0 0.0
  %715 = vmatmul.mubr.f32.gmra.mrb[0].mxu0 %v136
  %v716 = vpop.f32.mrb[0].mxu0
  %v717 = vadd.f32 %v648, %v716
  %v718 = vpop.f32.mrb[0].mxu0
  %719 = vmatprep.mubr.f32.mxu0 0.0
  %720 = vmatmul.mubr.f32.gmra.mrb[0].mxu0 %v139
  %v721 = vpop.f32.mrb[0].mxu0
  %v722 = vadd.f32 %v648, %v721
  %v723 = vpop.f32.mrb[0].mxu0
  %724 = vdwg.mxu0
  %v725 = vld [vmem:[%s6] sm:$0xff]
  %726 = vmatprep.subr.mxu0 0.0
  %727 = vmatpush1.msra.mxu0 %v642
  %728 = vmatprep.subr.mxu0 0.0
  %729 = vmatpush1.msra.mxu0 %v643
  %730 = vmatprep.subr.mxu0 0.0
  %731 = vmatpush1.msra.mxu0 0.0
  %732 = vmatprep.subr.mxu0 0.0
  %733 = vmatpush1.msra.mxu0 0.0
  %734 = vmatprep.subr.mxu0 0.0
  %735 = vmatpush1.msra.mxu0 0.0
  %736 = vmatprep.subr.mxu0 0.0
  %737 = vmatpush1.msra.mxu0 0.0
  %738 = vmatprep.subr.mxu0 0.0
  %739 = vmatpush1.msra.mxu0 0.0
  %740 = vmatprep.subr.mxu0 0.0
  %741 = vmatpush1.msra.mxu0 0.0
  %742 = vmatprep.subr.mxu0 0.0
  %743 = vmatpush1.msra.mxu0 0.0
  %744 = vmatprep.subr.mxu0 0.0
  %745 = vmatpush1.msra.mxu0 0.0
  %746 = vmatprep.subr.mxu0 0.0
  %747 = vmatpush1.msra.mxu0 0.0
  %748 = vmatprep.subr.mxu0 0.0
  %749 = vmatpush1.msra.mxu0 0.0
  %750 = vmatprep.subr.mxu0 0.0
  %751 = vmatpush1.msra.mxu0 0.0
  %752 = vmatprep.subr.mxu0 0.0
  %753 = vmatpush1.msra.mxu0 0.0
  %754 = vmatprep.subr.mxu0 0.0
  %755 = vmatpush1.msra.mxu0 0.0
  %756 = vmatprep.subr.mxu0 0.0
  %757 = vmatpush1.msra.mxu0 0.0
  %758 = vmatprep.subr.mxu0 0.0
  %759 = vmatpush1.msra.mxu0 0.0
  %760 = vmatprep.subr.mxu0 0.0
  %761 = vmatpush1.msra.mxu0 0.0
  %762 = vmatprep.subr.mxu0 0.0
  %763 = vmatpush1.msra.mxu0 0.0
  %764 = vmatprep.subr.mxu0 0.0
  %765 = vmatpush1.msra.mxu0 0.0
  %766 = vmatprep.subr.mxu0 0.0
  %767 = vmatpush1.msra.mxu0 0.0
  %768 = vmatprep.subr.mxu0 0.0
  %769 = vmatpush1.msra.mxu0 0.0
  %770 = vmatprep.subr.mxu0 0.0
  %771 = vmatpush1.msra.mxu0 0.0
  %772 = vmatprep.subr.mxu0 0.0
  %773 = vmatpush1.msra.mxu0 0.0
  %774 = vmatprep.subr.mxu0 0.0
  %775 = vmatpush1.msra.mxu0 0.0
  %776 = vmatprep.subr.mxu0 0.0
  %777 = vmatpush1.msra.mxu0 0.0
  %778 = vmatprep.subr.mxu0 0.0
  %779 = vmatpush1.msra.mxu0 0.0
  %780 = vmatprep.subr.mxu0 0.0
  %781 = vmatpush1.msra.mxu0 0.0
  %782 = vmatprep.subr.mxu0 0.0
  %783 = vmatpush1.msra.mxu0 0.0
  %784 = vmatprep.subr.mxu0 0.0
  %785 = vmatpush1.msra.mxu0 0.0
  %786 = vmatprep.subr.mxu0 0.0
  %787 = vmatpush1.msra.mxu0 0.0
  %788 = vmatprep.subr.mxu0 0.0
  %789 = vmatpush1.msra.mxu0 0.0
  %790 = vmatprep.mubr.f32.mxu0 0.0
  %791 = vmatmul.mubr.f32.gmra.mrb[0].mxu0 %v223
  %v792 = vpop.f32.mrb[0].mxu0
  %v793 = vadd.f32 %v648, %v792
  %v794 = vpop.f32.mrb[0].mxu0
  %795 = vmatprep.mubr.f32.mxu0 0.0
  %796 = vmatmul.mubr.f32.gmra.mrb[0].mxu0 %v226
  %v797 = vpop.f32.mrb[0].mxu0
  %v798 = vadd.f32 %v648, %v797
  %v799 = vpop.f32.mrb[0].mxu0
  %800 = vdwg.mxu0
  %s801 = scalar_lea.vmem %s6, 8
  %v802 = vld [vmem:[%s801] sm:$0xff]
  %v804 = vsel %vm38, %v793, 0
  %v807 = vsel %vm38, %v798, 0
  %809 = vmatprep.subr.mxu0 0.0
  %810 = vmatpush1.msra.mxu0 %v802
  %811 = vmatprep.subr.mxu0 0.0
  %812 = vmatpush1.msra.mxu0 0.0
  %813 = vmatprep.subr.mxu0 0.0
  %814 = vmatpush1.msra.mxu0 0.0
  %815 = vmatprep.subr.mxu0 0.0
  %816 = vmatpush1.msra.mxu0 0.0
  %817 = vmatprep.subr.mxu0 0.0
  %818 = vmatpush1.msra.mxu0 0.0
  %819 = vmatprep.subr.mxu0 0.0
  %820 = vmatpush1.msra.mxu0 0.0
  %821 = vmatprep.subr.mxu0 0.0
  %822 = vmatpush1.msra.mxu0 0.0
  %823 = vmatprep.subr.mxu0 0.0
  %824 = vmatpush1.msra.mxu0 0.0
  %825 = vmatprep.subr.mxu0 0.0
  %826 = vmatpush1.msra.mxu0 0.0
  %827 = vmatprep.subr.mxu0 0.0
  %828 = vmatpush1.msra.mxu0 0.0
  %829 = vmatprep.subr.mxu0 0.0
  %830 = vmatpush1.msra.mxu0 0.0
  %831 = vmatprep.subr.mxu0 0.0
  %832 = vmatpush1.msra.mxu0 0.0
  %833 = vmatprep.subr.mxu0 0.0
  %834 = vmatpush1.msra.mxu0 0.0
  %835 = vmatprep.subr.mxu0 0.0
  %836 = vmatpush1.msra.mxu0 0.0
  %837 = vmatprep.subr.mxu0 0.0
  %838 = vmatpush1.msra.mxu0 0.0
  %839 = vmatprep.subr.mxu0 0.0
  %840 = vmatpush1.msra.mxu0 0.0
  %841 = vmatprep.subr.mxu0 0.0
  %842 = vmatpush1.msra.mxu0 0.0
  %843 = vmatprep.subr.mxu0 0.0
  %844 = vmatpush1.msra.mxu0 0.0
  %845 = vmatprep.subr.mxu0 0.0
  %846 = vmatpush1.msra.mxu0 0.0
  %847 = vmatprep.subr.mxu0 0.0
  %848 = vmatpush1.msra.mxu0 0.0
  %849 = vmatprep.subr.mxu0 0.0
  %850 = vmatpush1.msra.mxu0 0.0
  %851 = vmatprep.subr.mxu0 0.0
  %852 = vmatpush1.msra.mxu0 0.0
  %853 = vmatprep.subr.mxu0 0.0
  %854 = vmatpush1.msra.mxu0 0.0
  %855 = vmatprep.subr.mxu0 0.0
  %856 = vmatpush1.msra.mxu0 0.0
  %857 = vmatprep.subr.mxu0 0.0
  %858 = vmatpush1.msra.mxu0 0.0
  %859 = vmatprep.subr.mxu0 0.0
  %860 = vmatpush1.msra.mxu0 0.0
  %861 = vmatprep.subr.mxu0 0.0
  %862 = vmatpush1.msra.mxu0 0.0
  %863 = vmatprep.subr.mxu0 0.0
  %864 = vmatpush1.msra.mxu0 0.0
  %865 = vmatprep.subr.mxu0 0.0
  %866 = vmatpush1.msra.mxu0 0.0
  %867 = vmatprep.subr.mxu0 0.0
  %868 = vmatpush1.msra.mxu0 0.0
  %869 = vmatprep.subr.mxu0 0.0
  %870 = vmatpush1.msra.mxu0 0.0
  %871 = vmatprep.subr.mxu0 0.0
  %872 = vmatpush1.msra.mxu0 0.0
  %873 = vmatprep.mubr.f32.mxu0 0.0
  %874 = vmatmul.mubr.f32.gmra.mrb[0].mxu0 %v804
  %v875 = vpop.f32.mrb[0].mxu0
  %v876 = vadd.f32 0.0, %v875
  %v877 = vpop.f32.mrb[0].mxu0
  %878 = vmatprep.mubr.f32.mxu0 0.0
  %879 = vmatmul.mubr.f32.gmra.mrb[0].mxu0 %v807
  %v880 = vpop.f32.mrb[0].mxu0
  %v881 = vadd.f32 0.0, %v880
  %v882 = vpop.f32.mrb[0].mxu0
  %883 = vdwg.mxu0
  %v885 = vsel %vm38, %v717, 0
  %v888 = vsel %vm38, %v722, 0
  %890 = vmatprep.subr.mxu0 0.0
  %891 = vmatpush1.msra.mxu0 %v725
  %892 = vmatprep.subr.mxu0 0.0
  %893 = vmatpush1.msra.mxu0 0.0
  %894 = vmatprep.subr.mxu0 0.0
  %895 = vmatpush1.msra.mxu0 0.0
  %896 = vmatprep.subr.mxu0 0.0
  %897 = vmatpush1.msra.mxu0 0.0
  %898 = vmatprep.subr.mxu0 0.0
  %899 = vmatpush1.msra.mxu0 0.0
  %900 = vmatprep.subr.mxu0 0.0
  %901 = vmatpush1.msra.mxu0 0.0
  %902 = vmatprep.subr.mxu0 0.0
  %903 = vmatpush1.msra.mxu0 0.0
  %904 = vmatprep.subr.mxu0 0.0
  %905 = vmatpush1.msra.mxu0 0.0
  %906 = vmatprep.subr.mxu0 0.0
  %907 = vmatpush1.msra.mxu0 0.0
  %908 = vmatprep.subr.mxu0 0.0
  %909 = vmatpush1.msra.mxu0 0.0
  %910 = vmatprep.subr.mxu0 0.0
  %911 = vmatpush1.msra.mxu0 0.0
  %912 = vmatprep.subr.mxu0 0.0
  %913 = vmatpush1.msra.mxu0 0.0
  %914 = vmatprep.subr.mxu0 0.0
  %915 = vmatpush1.msra.mxu0 0.0
  %916 = vmatprep.subr.mxu0 0.0
  %917 = vmatpush1.msra.mxu0 0.0
  %918 = vmatprep.subr.mxu0 0.0
  %919 = vmatpush1.msra.mxu0 0.0
  %920 = vmatprep.subr.mxu0 0.0
  %921 = vmatpush1.msra.mxu0 0.0
  %922 = vmatprep.subr.mxu0 0.0
  %923 = vmatpush1.msra.mxu0 0.0
  %924 = vmatprep.subr.mxu0 0.0
  %925 = vmatpush1.msra.mxu0 0.0
  %926 = vmatprep.subr.mxu0 0.0
  %927 = vmatpush1.msra.mxu0 0.0
  %928 = vmatprep.subr.mxu0 0.0
  %929 = vmatpush1.msra.mxu0 0.0
  %930 = vmatprep.subr.mxu0 0.0
  %931 = vmatpush1.msra.mxu0 0.0
  %932 = vmatprep.subr.mxu0 0.0
  %933 = vmatpush1.msra.mxu0 0.0
  %934 = vmatprep.subr.mxu0 0.0
  %935 = vmatpush1.msra.mxu0 0.0
  %936 = vmatprep.subr.mxu0 0.0
  %937 = vmatpush1.msra.mxu0 0.0
  %938 = vmatprep.subr.mxu0 0.0
  %939 = vmatpush1.msra.mxu0 0.0
  %940 = vmatprep.subr.mxu0 0.0
  %941 = vmatpush1.msra.mxu0 0.0
  %942 = vmatprep.subr.mxu0 0.0
  %943 = vmatpush1.msra.mxu0 0.0
  %944 = vmatprep.subr.mxu0 0.0
  %945 = vmatpush1.msra.mxu0 0.0
  %946 = vmatprep.subr.mxu0 0.0
  %947 = vmatpush1.msra.mxu0 0.0
  %948 = vmatprep.subr.mxu0 0.0
  %949 = vmatpush1.msra.mxu0 0.0
  %950 = vmatprep.subr.mxu0 0.0
  %951 = vmatpush1.msra.mxu0 0.0
  %952 = vmatprep.subr.mxu0 0.0
  %953 = vmatpush1.msra.mxu0 0.0
  %954 = vmatprep.mubr.f32.mxu0 0.0
  %955 = vmatmul.mubr.f32.gmra.mrb[0].mxu0 %v885
  %v956 = vpop.f32.mrb[0].mxu0
  %v957 = vadd.f32 %v876, %v956
  %v958 = vpop.f32.mrb[0].mxu0
  %959 = vmatprep.mubr.f32.mxu0 0.0
  %960 = vmatmul.mubr.f32.gmra.mrb[0].mxu0 %v888
  %v961 = vpop.f32.mrb[0].mxu0
  %v962 = vadd.f32 %v881, %v961
  %v963 = vpop.f32.mrb[0].mxu0
  %964 = vdwg.mxu0
  %965 = vmatprep.subr.mxu0 0.0
  %966 = vmatpush1.msra.mxu0 %v642
  %967 = vmatprep.subr.mxu0 0.0
  %968 = vmatpush1.msra.mxu0 %v643
  %969 = vmatprep.subr.mxu0 0.0
  %970 = vmatpush1.msra.mxu0 0.0
  %971 = vmatprep.subr.mxu0 0.0
  %972 = vmatpush1.msra.mxu0 0.0
  %973 = vmatprep.subr.mxu0 0.0
  %974 = vmatpush1.msra.mxu0 0.0
  %975 = vmatprep.subr.mxu0 0.0
  %976 = vmatpush1.msra.mxu0 0.0
  %977 = vmatprep.subr.mxu0 0.0
  %978 = vmatpush1.msra.mxu0 0.0
  %979 = vmatprep.subr.mxu0 0.0
  %980 = vmatpush1.msra.mxu0 0.0
  %981 = vmatprep.subr.mxu0 0.0
  %982 = vmatpush1.msra.mxu0 0.0
  %983 = vmatprep.subr.mxu0 0.0
  %984 = vmatpush1.msra.mxu0 0.0
  %985 = vmatprep.subr.mxu0 0.0
  %986 = vmatpush1.msra.mxu0 0.0
  %987 = vmatprep.subr.mxu0 0.0
  %988 = vmatpush1.msra.mxu0 0.0
  %989 = vmatprep.subr.mxu0 0.0
  %990 = vmatpush1.msra.mxu0 0.0
  %991 = vmatprep.subr.mxu0 0.0
  %992 = vmatpush1.msra.mxu0 0.0
  %993 = vmatprep.subr.mxu0 0.0
  %994 = vmatpush1.msra.mxu0 0.0
  %995 = vmatprep.subr.mxu0 0.0
  %996 = vmatpush1.msra.mxu0 0.0
  %997 = vmatprep.subr.mxu0 0.0
  %998 = vmatpush1.msra.mxu0 0.0
  %999 = vmatprep.subr.mxu0 0.0
  %1000 = vmatpush1.msra.mxu0 0.0
  %1001 = vmatprep.subr.mxu0 0.0
  %1002 = vmatpush1.msra.mxu0 0.0
  %1003 = vmatprep.subr.mxu0 0.0
  %1004 = vmatpush1.msra.mxu0 0.0
  %1005 = vmatprep.subr.mxu0 0.0
  %1006 = vmatpush1.msra.mxu0 0.0
  %1007 = vmatprep.subr.mxu0 0.0
  %1008 = vmatpush1.msra.mxu0 0.0
  %1009 = vmatprep.subr.mxu0 0.0
  %1010 = vmatpush1.msra.mxu0 0.0
  %1011 = vmatprep.subr.mxu0 0.0
  %1012 = vmatpush1.msra.mxu0 0.0
  %1013 = vmatprep.subr.mxu0 0.0
  %1014 = vmatpush1.msra.mxu0 0.0
  %1015 = vmatprep.subr.mxu0 0.0
  %1016 = vmatpush1.msra.mxu0 0.0
  %1017 = vmatprep.subr.mxu0 0.0
  %1018 = vmatpush1.msra.mxu0 0.0
  %1019 = vmatprep.subr.mxu0 0.0
  %1020 = vmatpush1.msra.mxu0 0.0
  %1021 = vmatprep.subr.mxu0 0.0
  %1022 = vmatpush1.msra.mxu0 0.0
  %1023 = vmatprep.subr.mxu0 0.0
  %1024 = vmatpush1.msra.mxu0 0.0
  %1025 = vmatprep.subr.mxu0 0.0
  %1026 = vmatpush1.msra.mxu0 0.0
  %1027 = vmatprep.subr.mxu0 0.0
  %1028 = vmatpush1.msra.mxu0 0.0
  %1029 = vmatprep.mubr.f32.mxu0 0.0
  %1030 = vmatmul.mubr.f32.gmra.mrb[0].mxu0 %v474
  %v1031 = vpop.f32.mrb[0].mxu0
  %v1032 = vadd.f32 %v648, %v1031
  %v1033 = vpop.f32.mrb[0].mxu0
  %1034 = vmatprep.mubr.f32.mxu0 0.0
  %1035 = vmatmul.mubr.f32.gmra.mrb[0].mxu0 %v477
  %v1036 = vpop.f32.mrb[0].mxu0
  %v1037 = vadd.f32 %v648, %v1036
  %v1038 = vpop.f32.mrb[0].mxu0
  %1039 = vdwg.mxu0
  %s1040 = scalar_lea.vmem %s6, 16
  %v1041 = vld [vmem:[%s1040] sm:$0xff]
  %v1043 = vsel %vm38, %v1032, 0
  %v1046 = vsel %vm38, %v1037, 0
  %1048 = vmatprep.subr.mxu0 0.0
  %1049 = vmatpush1.msra.mxu0 %v1041
  %1050 = vmatprep.subr.mxu0 0.0
  %1051 = vmatpush1.msra.mxu0 0.0
  %1052 = vmatprep.subr.mxu0 0.0
  %1053 = vmatpush1.msra.mxu0 0.0
  %1054 = vmatprep.subr.mxu0 0.0
  %1055 = vmatpush1.msra.mxu0 0.0
  %1056 = vmatprep.subr.mxu0 0.0
  %1057 = vmatpush1.msra.mxu0 0.0
  %1058 = vmatprep.subr.mxu0 0.0
  %1059 = vmatpush1.msra.mxu0 0.0
  %1060 = vmatprep.subr.mxu0 0.0
  %1061 = vmatpush1.msra.mxu0 0.0
  %1062 = vmatprep.subr.mxu0 0.0
  %1063 = vmatpush1.msra.mxu0 0.0
  %1064 = vmatprep.subr.mxu0 0.0
  %1065 = vmatpush1.msra.mxu0 0.0
  %1066 = vmatprep.subr.mxu0 0.0
  %1067 = vmatpush1.msra.mxu0 0.0
  %1068 = vmatprep.subr.mxu0 0.0
  %1069 = vmatpush1.msra.mxu0 0.0
  %1070 = vmatprep.subr.mxu0 0.0
  %1071 = vmatpush1.msra.mxu0 0.0
  %1072 = vmatprep.subr.mxu0 0.0
  %1073 = vmatpush1.msra.mxu0 0.0
  %1074 = vmatprep.subr.mxu0 0.0
  %1075 = vmatpush1.msra.mxu0 0.0
  %1076 = vmatprep.subr.mxu0 0.0
  %1077 = vmatpush1.msra.mxu0 0.0
  %1078 = vmatprep.subr.mxu0 0.0
  %1079 = vmatpush1.msra.mxu0 0.0
  %1080 = vmatprep.subr.mxu0 0.0
  %1081 = vmatpush1.msra.mxu0 0.0
  %1082 = vmatprep.subr.mxu0 0.0
  %1083 = vmatpush1.msra.mxu0 0.0
  %1084 = vmatprep.subr.mxu0 0.0
  %1085 = vmatpush1.msra.mxu0 0.0
  %1086 = vmatprep.subr.mxu0 0.0
  %1087 = vmatpush1.msra.mxu0 0.0
  %1088 = vmatprep.subr.mxu0 0.0
  %1089 = vmatpush1.msra.mxu0 0.0
  %1090 = vmatprep.subr.mxu0 0.0
  %1091 = vmatpush1.msra.mxu0 0.0
  %1092 = vmatprep.subr.mxu0 0.0
  %1093 = vmatpush1.msra.mxu0 0.0
  %1094 = vmatprep.subr.mxu0 0.0
  %1095 = vmatpush1.msra.mxu0 0.0
  %1096 = vmatprep.subr.mxu0 0.0
  %1097 = vmatpush1.msra.mxu0 0.0
  %1098 = vmatprep.subr.mxu0 0.0
  %1099 = vmatpush1.msra.mxu0 0.0
  %1100 = vmatprep.subr.mxu0 0.0
  %1101 = vmatpush1.msra.mxu0 0.0
  %1102 = vmatprep.subr.mxu0 0.0
  %1103 = vmatpush1.msra.mxu0 0.0
  %1104 = vmatprep.subr.mxu0 0.0
  %1105 = vmatpush1.msra.mxu0 0.0
  %1106 = vmatprep.subr.mxu0 0.0
  %1107 = vmatpush1.msra.mxu0 0.0
  %1108 = vmatprep.subr.mxu0 0.0
  %1109 = vmatpush1.msra.mxu0 0.0
  %1110 = vmatprep.subr.mxu0 0.0
  %1111 = vmatpush1.msra.mxu0 0.0
  %1112 = vmatprep.mubr.f32.mxu0 0.0
  %1113 = vmatmul.mubr.f32.gmra.mrb[0].mxu0 %v1043
  %v1114 = vpop.f32.mrb[0].mxu0
  %v1115 = vadd.f32 0.0, %v1114
  %v1116 = vpop.f32.mrb[0].mxu0
  %1117 = vmatprep.mubr.f32.mxu0 0.0
  %1118 = vmatmul.mubr.f32.gmra.mrb[0].mxu0 %v1046
  %v1119 = vpop.f32.mrb[0].mxu0
  %v1120 = vadd.f32 0.0, %v1119
  %v1121 = vpop.f32.mrb[0].mxu0
  %1122 = vdwg.mxu0
  %v1123 = vadd.f32 %v957, %v1115
  %v1124 = vadd.f32 %v962, %v1120
  %v1125 = vld [vmem:[%s9] sm:$0x1]
  %v1127 = vlaneseq
  %v1128 = vshrl.u32 %v1127, 7
  %v1129 = vsub.s32 0, %v1128
  %v1130 = vrot.slane %v1125, %v1129
  %v1132 = vadd.f32 %v1123, %v1130
  %v1133 = vadd.f32 %v1124, %v1130
  %1134 = vst.msk [vmem:[%s10] sm:$0xff] %vm38, %v1132
  %1135 = vst.msk [vmem:[%s10 + $0x8] sm:$0xff] %vm38, %v1133
  // Predicated region
  $region42: #{sym_reg_layer2_apply.1} parent=0 // pred_check
    _
  $region43: #{sym_reg_layer2_apply.1} parent=0 // pred_check_branch
    %1137 = sbr.rel (0) target = $region45
  $region44: #{sym_reg_layer2_apply.1} parent=0 // pred_region
    _
  $region45: #{sym_reg_layer2_apply.1} parent=0 // pred_fallthru
    _
  // Predicated region
  $region46: #{sym_reg_layer2_apply.1} parent=0 // pred_check
    _
  $region47: #{sym_reg_layer2_apply.1} parent=0 // pred_check_branch
    %1139 = sbr.rel (0) target = $region49
  $region48: #{sym_reg_layer2_apply.1} parent=0 // pred_region
    _
  $region49: #{sym_reg_layer2_apply.1} parent=0 // pred_fallthru
    _

</llo_original>
